<compile_context>
chip_gen: v6e
topology: v6e:2x2x1
jax: 0.10.0
libtpu: 0.0.40
codegen_flags: <defaults>
</compile_context>

<pallas_src>
import jax
import jax.numpy as jnp
from jax.experimental import pallas as pl
from jax.experimental.pallas import tpu as pltpu


def value_net_kernel(xT_ref, w1t_ref, b1_ref, w2t_ref, b2_ref, w3_ref, b3_ref,
                     o_ref):
    """One batch tile (batch in lanes) of the fused 3-layer MLP.

    xT_ref:  [S, TB]      state^T tile (f32 or bf16)
    w1t_ref: [128, S]     W1^T (same dtype as xT)
    b1_ref:  [128, 1]     f32
    w2t_ref: [64, 128]    W2^T (same dtype as xT)
    b2_ref:  [64, 1]      f32
    w3_ref:  [1, 64]      W3^T row, f32
    b3_ref:  [1, 1]       f32 scalar in SMEM
    o_ref:   [1, TB]      f32 lane-dense output block
    """
    # Layer 1: (128, S) @ (S, TB) -> (128, TB); MXU with f32 accumulation.
    h1 = jnp.dot(w1t_ref[...], xT_ref[...], preferred_element_type=jnp.float32)
    h1 = jnp.maximum(h1 + b1_ref[...], 0.0)                 # f32 VPU epilogue

    # Layer 2: (64, 128) @ (128, TB) -> (64, TB).
    h2 = jnp.dot(w2t_ref[...], h1.astype(w2t_ref.dtype),
                 preferred_element_type=jnp.float32)
    h2 = jnp.maximum(h2 + b2_ref[...], 0.0)

    # Layer 3: (1, 64) @ (64, TB) -> (1, TB); already lane-dense, SMEM scalar bias.
    o_ref[...] = (jnp.dot(w3_ref[...], h2, preferred_element_type=jnp.float32)
                  + b3_ref[0, 0])


def _round_up(x, m):
    return ((x + m - 1) // m) * m


def _plan_grid(B):
    """Return (TB, num_tiles) for the batch axis.

    - B <= 256:  one block equal to the full batch extent (no OOB, 1 step).
    - B <= 8192: exactly 2 steps (TB = round_up(ceil(B/2), 128)) so v7x megacore
                 shards across both TensorCores while per-step overhead stays tiny.
    - larger:    1024-wide tiles (keep the step count even for v7x if you care).
    """
    if B <= 256:
        return B, 1
    if B <= 8192:
        tb = _round_up((B + 1) // 2, 128)
        return tb, -(-B // tb)          # == 2
    return 1024, -(-B // 1024)


def value_net_forward(state, params, *, use_bf16=True, batch_tile=None,
                      transposed_state=False):
    """state: [B, state_dim] f32 (or [state_dim, B] if transposed_state)
       -> value: [B, 1] f32."""
    w1, b1, w2, b2, w3, b3 = params          # w: [in, out], b: [1, out]
    if transposed_state:
        S, B = state.shape
    else:
        B, S = state.shape

    if batch_tile is not None:
        TB = int(batch_tile)
        num_tiles = -(-B // TB)
        assert num_tiles == 1 or TB % 128 == 0, "batch_tile must be a multiple of 128"
    else:
        TB, num_tiles = _plan_grid(B)
    B_out = num_tiles * TB                    # lane-dense output slab width (>= B)

    compute_dtype = jnp.bfloat16 if use_bf16 else jnp.float32

    # One-off layout plumbing (tiny arrays; pre-transpose weights outside jit in
    # a real deployment).  Biases / layer-3 row / epilogue stay f32.
    xT = state if transposed_state else state.T
    xT = xT.astype(compute_dtype)                         # (S, B): batch in lanes
    w1t = w1.T.astype(compute_dtype)                      # (128, S)
    w2t = w2.T.astype(compute_dtype)                      # (64, 128)
    b1c = b1.reshape(128, 1).astype(jnp.float32)
    b2c = b2.reshape(64, 1).astype(jnp.float32)
    w3row = w3.reshape(1, 64).astype(jnp.float32)         # == W3^T
    b3s = b3.reshape(1, 1).astype(jnp.float32)

    out = pl.pallas_call(
        value_net_kernel,
        out_shape=jax.ShapeDtypeStruct((1, B_out), jnp.float32),
        grid=(num_tiles,),
        in_specs=[
            pl.BlockSpec((S, TB), lambda i: (0, i)),      # state^T: tiled over lanes
            pl.BlockSpec((128, S), lambda i: (0, 0)),     # W1^T  (VMEM-resident)
            pl.BlockSpec((128, 1), lambda i: (0, 0)),     # b1
            pl.BlockSpec((64, 128), lambda i: (0, 0)),    # W2^T
            pl.BlockSpec((64, 1), lambda i: (0, 0)),      # b2
            pl.BlockSpec((1, 64), lambda i: (0, 0)),      # W3^T row
            pl.BlockSpec(memory_space=pltpu.MemorySpace.SMEM),  # b3 scalar
        ],
        out_specs=pl.BlockSpec((1, TB), lambda i: (0, i)),  # lane-dense slab
        compiler_params=pltpu.CompilerParams(
            dimension_semantics=("parallel",)),             # megacore on v7x
    )(xT, w1t, b1c, w2t, b2c, w3row, b3s)

    # Lane-dense slab -> [B, 1]; padded tail columns (if any) are garbage and
    # must be (and are) sliced off here before any downstream use.
    return out[0, :B].reshape(B, 1)


def init_value_net_params(key, state_dim):
    """Deterministic init matching PyTorch nn.Linear default:
    U(-1/sqrt(fan_in), 1/sqrt(fan_in)) for weight and bias.
    Weights stored as [in_features, out_features] (transposed vs. PyTorch)."""
    dims = [(state_dim, 128), (128, 64), (64, 1)]
    params = []
    for (fan_in, fan_out) in dims:
        key, kw, kb = jax.random.split(key, 3)
        bound = 1.0 / jnp.sqrt(fan_in)
        w = jax.random.uniform(kw, (fan_in, fan_out), jnp.float32, -bound, bound)
        b = jax.random.uniform(kb, (1, fan_out), jnp.float32, -bound, bound)
        params += [w, b]
    return tuple(params)


def value_net_ref(state, params):
    """Pure-JAX reference for correctness checking."""
    w1, b1, w2, b2, w3, b3 = params
    h1 = jnp.maximum(state @ w1 + b1, 0.0)
    h2 = jnp.maximum(h1 @ w2 + b2, 0.0)
    return h2 @ w3 + b3


if __name__ == "__main__":
    key = jax.random.PRNGKey(0)
    key, kx1, kx2 = jax.random.split(key, 3)

    state_dim = 16
    params = init_value_net_params(key, state_dim)

    # 1) Tiny deployment batch (single full-extent block, no OOB), f32 path.
    state_small = jax.random.normal(kx1, (2, state_dim), jnp.float32)
    ref_small = value_net_ref(state_small, params)
    out_small = jax.block_until_ready(
        value_net_forward(state_small, params, use_bf16=False))
    assert out_small.shape == (2, 1)
    assert jnp.allclose(out_small, ref_small, atol=1e-5, rtol=1e-5)

    # 2) Ragged medium batch: exercises the 2-step grid + partial-tail block path.
    state_med = jax.random.normal(kx2, (300, state_dim), jnp.float32)
    ref_med = value_net_ref(state_med, params)
    out_med = jax.block_until_ready(
        value_net_forward(state_med, params, use_bf16=False))
    assert out_med.shape == (300, 1)
    assert jnp.allclose(out_med, ref_med, atol=1e-5, rtol=1e-5)

    # 3) Default bf16-operand path (f32 accumulation/epilogue): loose tolerance.
    out_bf16 = jax.block_until_ready(value_net_forward(state_med, params))
    assert out_bf16.shape == (300, 1)
    assert jnp.allclose(out_bf16, ref_med, atol=1e-1, rtol=1e-1)

    print("KERNEL_OK")
</pallas_src>

<mosaic_0001>
module attributes {stable_mosaic.version = 11 : i64} {
  func.func @value_net_kernel(%arg0: i32, %arg1: memref<16x2xf32, #tpu.memory_space<vmem>>, %arg2: memref<128x16xf32, #tpu.memory_space<vmem>>, %arg3: memref<128x1xf32, #tpu.memory_space<vmem>>, %arg4: memref<64x128xf32, #tpu.memory_space<vmem>>, %arg5: memref<64x1xf32, #tpu.memory_space<vmem>>, %arg6: memref<1x64xf32, #tpu.memory_space<vmem>>, %arg7: memref<1x1xf32, #tpu.memory_space<smem>>, %arg8: memref<1x2xf32, #tpu.memory_space<vmem>>) attributes {dimension_semantics = [#tpu.dimension_semantics<parallel>], iteration_bounds = array<i64: 1>, scalar_prefetch = 0 : i64, scratch_operands = 0 : i64, tpu.core_type = #tpu.core_type<tc>, window_params = [{transform_indices = @transform_0, window_bounds = array<i64: 16, 2>}, {pipeline_mode = #tpu.pipeline_mode<synchronous>, transform_indices = @transform_1, window_bounds = array<i64: 128, 16>}, {pipeline_mode = #tpu.pipeline_mode<synchronous>, transform_indices = @transform_2, window_bounds = array<i64: 128, 1>}, {pipeline_mode = #tpu.pipeline_mode<synchronous>, transform_indices = @transform_3, window_bounds = array<i64: 64, 128>}, {pipeline_mode = #tpu.pipeline_mode<synchronous>, transform_indices = @transform_4, window_bounds = array<i64: 64, 1>}, {pipeline_mode = #tpu.pipeline_mode<synchronous>, transform_indices = @transform_5, window_bounds = array<i64: 1, 64>}, {transform_indices = @transform_6, window_bounds = array<i64: 1, 1>}, {transform_indices = @transform_7, window_bounds = array<i64: 1, 2>}]} {
    %c0 = arith.constant 0 : index
    %c0_0 = arith.constant 0 : index
    %0 = vector.load %arg2[%c0, %c0_0] : memref<128x16xf32, #tpu.memory_space<vmem>>, vector<128x16xf32>
    %c0_1 = arith.constant 0 : index
    %c0_2 = arith.constant 0 : index
    %1 = vector.load %arg1[%c0_1, %c0_2] : memref<16x2xf32, #tpu.memory_space<vmem>>, vector<16x2xf32>
    %cst = arith.constant dense<0.000000e+00> : vector<128x2xf32>
    %2 = tpu.matmul %0, %1, %cst {dimension_numbers = #tpu.dot_dimension_numbers<[1], [0], [0], [1], [0, 0, 1, 1], [], []>} : vector<128x16xf32>, vector<16x2xf32>, vector<128x2xf32> -> vector<128x2xf32>
    %c0_3 = arith.constant 0 : index
    %c0_4 = arith.constant 0 : index
    %3 = vector.load %arg3[%c0_3, %c0_4] : memref<128x1xf32, #tpu.memory_space<vmem>>, vector<128x1xf32>
    %4 = vector.broadcast %3 : vector<128x1xf32> to vector<128x2xf32>
    %5 = arith.addf %2, %4 : vector<128x2xf32>
    %cst_5 = arith.constant 0.000000e+00 : f32
    %6 = vector.broadcast %cst_5 : f32 to vector<128x2xf32>
    %7 = arith.maximumf %5, %6 : vector<128x2xf32>
    %c0_6 = arith.constant 0 : index
    %c0_7 = arith.constant 0 : index
    %8 = vector.load %arg4[%c0_6, %c0_7] : memref<64x128xf32, #tpu.memory_space<vmem>>, vector<64x128xf32>
    %cst_8 = arith.constant dense<0.000000e+00> : vector<64x2xf32>
    %9 = tpu.matmul %8, %7, %cst_8 {dimension_numbers = #tpu.dot_dimension_numbers<[1], [0], [0], [1], [0, 0, 1, 1], [], []>} : vector<64x128xf32>, vector<128x2xf32>, vector<64x2xf32> -> vector<64x2xf32>
    %c0_9 = arith.constant 0 : index
    %c0_10 = arith.constant 0 : index
    %10 = vector.load %arg5[%c0_9, %c0_10] : memref<64x1xf32, #tpu.memory_space<vmem>>, vector<64x1xf32>
    %11 = vector.broadcast %10 : vector<64x1xf32> to vector<64x2xf32>
    %12 = arith.addf %9, %11 : vector<64x2xf32>
    %cst_11 = arith.constant 0.000000e+00 : f32
    %13 = vector.broadcast %cst_11 : f32 to vector<64x2xf32>
    %14 = arith.maximumf %12, %13 : vector<64x2xf32>
    %c0_12 = arith.constant 0 : index
    %c0_13 = arith.constant 0 : index
    %15 = vector.load %arg6[%c0_12, %c0_13] : memref<1x64xf32, #tpu.memory_space<vmem>>, vector<1x64xf32>
    %cst_14 = arith.constant dense<0.000000e+00> : vector<1x2xf32>
    %16 = tpu.matmul %15, %14, %cst_14 {dimension_numbers = #tpu.dot_dimension_numbers<[1], [0], [0], [1], [0, 0, 1, 1], [], []>} : vector<1x64xf32>, vector<64x2xf32>, vector<1x2xf32> -> vector<1x2xf32>
    %c0_15 = arith.constant 0 : index
    %c0_16 = arith.constant 0 : index
    %17 = memref.load %arg7[%c0_15, %c0_16] : memref<1x1xf32, #tpu.memory_space<smem>>
    %18 = vector.broadcast %17 : f32 to vector<1x2xf32>
    %19 = arith.addf %16, %18 : vector<1x2xf32>
    %c0_17 = arith.constant 0 : index
    %c0_18 = arith.constant 0 : index
    %20 = vector.load %arg8[%c0_17, %c0_18] : memref<1x2xf32, #tpu.memory_space<vmem>>, vector<1x2xf32>
    tpu.vector_store %arg8[%c0_17, %c0_18], %19 {strides = array<i32>} : memref<1x2xf32, #tpu.memory_space<vmem>>, vector<1x2xf32>,
    return
  }
  func.func @transform_0(%arg0: i32) -> (i32, i32) {
    %c0_i32 = arith.constant 0 : i32
    %c0_i32_0 = arith.constant 0 : i32
    return %c0_i32, %arg0 : i32, i32
  }
  func.func @transform_1(%arg0: i32) -> (i32, i32) {
    %c0_i32 = arith.constant 0 : i32
    %c0_i32_0 = arith.constant 0 : i32
    %c0_i32_1 = arith.constant 0 : i32
    return %c0_i32, %c0_i32_0 : i32, i32
  }
  func.func @transform_2(%arg0: i32) -> (i32, i32) {
    %c0_i32 = arith.constant 0 : i32
    %c0_i32_0 = arith.constant 0 : i32
    %c0_i32_1 = arith.constant 0 : i32
    return %c0_i32, %c0_i32_0 : i32, i32
  }
  func.func @transform_3(%arg0: i32) -> (i32, i32) {
    %c0_i32 = arith.constant 0 : i32
    %c0_i32_0 = arith.constant 0 : i32
    %c0_i32_1 = arith.constant 0 : i32
    return %c0_i32, %c0_i32_0 : i32, i32
  }
  func.func @transform_4(%arg0: i32) -> (i32, i32) {
    %c0_i32 = arith.constant 0 : i32
    %c0_i32_0 = arith.constant 0 : i32
    %c0_i32_1 = arith.constant 0 : i32
    return %c0_i32, %c0_i32_0 : i32, i32
  }
  func.func @transform_5(%arg0: i32) -> (i32, i32) {
    %c0_i32 = arith.constant 0 : i32
    %c0_i32_0 = arith.constant 0 : i32
    %c0_i32_1 = arith.constant 0 : i32
    return %c0_i32, %c0_i32_0 : i32, i32
  }
  func.func @transform_6(%arg0: i32) -> (i32, i32) {
    %c0_i32 = arith.constant 0 : i32
    %c0_i32_0 = arith.constant 0 : i32
    %c0_i32_1 = arith.constant 0 : i32
    return %c0_i32, %c0_i32_0 : i32, i32
  }
  func.func @transform_7(%arg0: i32) -> (i32, i32) {
    %c0_i32 = arith.constant 0 : i32
    %c0_i32_0 = arith.constant 0 : i32
    return %c0_i32, %arg0 : i32, i32
  }
}

</mosaic_0001>

<llo_original>
// kernel: tpu_custom_call.1
$region0: #{tpu_custom_call.1}
  #allocation0 [shape = 'u32[]', space=smem, size = 0x4, offset = 0x4, fixed_abs, tag = 'smem constant byte address 0x4 - core index']
  #allocation1 [shape = 'u32[144,128]{1,0:T(1,128)}', space=vmem, size = 0x12000, scoped, tag = 'internal scratch']
  #allocation2 [shape = 'f32[1,1]{1,0:T(1,128)S(6)}', space=smem, size = 0x200, scoped, tag = 'scoped memory for tpu_custom_call.1']
  %s0 = inlined_call_operand.vmem [shape: f32[16,2], index: 0, kind: input, shape index: {}]
  %s1 = inlined_call_operand.vmem [shape: f32[128,16], index: 1, kind: input, shape index: {}]
  %s2 = inlined_call_operand.vmem [shape: f32[128,1], index: 2, kind: input, shape index: {}]
  %s3 = inlined_call_operand.vmem [shape: f32[64,128], index: 3, kind: input, shape index: {}]
  %s4 = inlined_call_operand.vmem [shape: f32[64,1], index: 4, kind: input, shape index: {}]
  %s5 = inlined_call_operand.vmem [shape: f32[1,64], index: 5, kind: input, shape index: {}]
  %s6 = inlined_call_operand.<no memory space> [shape: f32[1,1], index: 6, kind: input, shape index: {}]
  %s7 = inlined_call_operand.hbm [shape: f32[1,2], index: 7, kind: output, shape index: {}]
  %s8 = sld [smem:[#allocation0]]
  $region38: #{tpu_custom_call.1} parent=0
    _
  %s10 = ssub.s32 1, %s8
  %s11 = scalar_select 0, %s10, %s8
  %12 = sst [smem:[#allocation2]] %s6
  $region1: #{tpu_custom_call.1} parent=0
    #allocation3 [shape = 'u8[512]{0}', space=vmem, size = 0x400, scoped, tag = 'output window, operand 0, single buffered']
    #allocation4 [shape = 's32[1]{0}', space=sflag, size = 0x4, scoped, tag = 'scoped memory for tpu_custom_call.1']
    %13 = vsyncpa [#allocation4], 0
    // Predicated region
    $region2: #{tpu_custom_call.1} parent=1 // pred_check
      _
    $region3: #{tpu_custom_call.1} parent=1 // pred_check_branch
      %15 = sbr.rel (0) target = $region5
    $region4: #{tpu_custom_call.1} parent=1 // pred_region
      _
    $region5: #{tpu_custom_call.1} parent=1 // pred_fallthru
      _
    // Predicated region
    $region6: #{tpu_custom_call.1} parent=1 // pred_check
      _
    $region7: #{tpu_custom_call.1} parent=1 // pred_check_branch
      %17 = sbr.rel (0) target = $region9
    $region8: #{tpu_custom_call.1} parent=1 // pred_region
      _
    $region9: #{tpu_custom_call.1} parent=1 // pred_fallthru
      _
    // Predicated region
    $region10: #{tpu_custom_call.1} parent=1 // pred_check
      _
    $region11: #{tpu_custom_call.1} parent=1 // pred_check_branch
      %19 = sbr.rel (0) target = $region13
    $region12: #{tpu_custom_call.1} parent=1 // pred_region
      _
    $region13: #{tpu_custom_call.1} parent=1 // pred_fallthru
      _
    // Predicated region
    $region14: #{tpu_custom_call.1} parent=1 // pred_check
      _
    $region15: #{tpu_custom_call.1} parent=1 // pred_check_branch
      %21 = sbr.rel (0) target = $region17
    $region16: #{tpu_custom_call.1} parent=1 // pred_region
      _
    $region17: #{tpu_custom_call.1} parent=1 // pred_fallthru
      _
    // Predicated region
    $region18: #{tpu_custom_call.1} parent=1 // pred_check
      _
    $region19: #{tpu_custom_call.1} parent=1 // pred_check_branch
      %23 = sbr.rel (0) target = $region21
    $region20: #{tpu_custom_call.1} parent=1 // pred_region
      _
    $region21: #{tpu_custom_call.1} parent=1 // pred_fallthru
      _
    // Predicated region
    $region22: #{tpu_custom_call.1} parent=1 // pred_check
      _
    $region23: #{tpu_custom_call.1} parent=1 // pred_check_branch
      %25 = sbr.rel (0) target = $region25
    $region24: #{tpu_custom_call.1} parent=1 // pred_region
      _
    $region25: #{tpu_custom_call.1} parent=1 // pred_fallthru
      _
    // Predicated region
    $region26: #{tpu_custom_call.1} parent=1 // pred_check
      _
    $region27: #{tpu_custom_call.1} parent=1 // pred_check_branch
      %27 = sbr.rel (0) target = $region29
    $region28: #{tpu_custom_call.1} parent=1 // pred_region
      _
    $region29: #{tpu_custom_call.1} parent=1 // pred_fallthru
      _
    %v28 = vld [vmem:[%s1] sm:$0xff]
    %v29 = vld [vmem:[%s1 + $0x8] sm:$0xff]
    %v30 = vld [vmem:[%s1 + $0x10] sm:$0xff]
    %v31 = vld [vmem:[%s1 + $0x18] sm:$0xff]
    %v32 = vld [vmem:[%s1 + $0x20] sm:$0xff]
    %v33 = vld [vmem:[%s1 + $0x28] sm:$0xff]
    %v34 = vld [vmem:[%s1 + $0x30] sm:$0xff]
    %v35 = vld [vmem:[%s1 + $0x38] sm:$0xff]
    %v36 = vld [vmem:[%s1 + $0x40] sm:$0xff]
    %v37 = vld [vmem:[%s1 + $0x48] sm:$0xff]
    %v38 = vld [vmem:[%s1 + $0x50] sm:$0xff]
    %v39 = vld [vmem:[%s1 + $0x58] sm:$0xff]
    %v40 = vld [vmem:[%s1 + $0x60] sm:$0xff]
    %v41 = vld [vmem:[%s1 + $0x68] sm:$0xff]
    %v42 = vld [vmem:[%s1 + $0x70] sm:$0xff]
    %v43 = vld [vmem:[%s1 + $0x78] sm:$0xff]
    %v44 = vld [vmem:[%s0] sm:$0xff]
    %v45 = vld [vmem:[%s0 + $0x8] sm:$0xff]
    %v46 = vld [vmem:[%s2] sm:$0xff]
    %v47 = vld [vmem:[%s2 + $0x8] sm:$0xff]
    %v48 = vld [vmem:[%s2 + $0x10] sm:$0xff]
    %v49 = vld [vmem:[%s2 + $0x18] sm:$0xff]
    %v50 = vld [vmem:[%s2 + $0x20] sm:$0xff]
    %v51 = vld [vmem:[%s2 + $0x28] sm:$0xff]
    %v52 = vld [vmem:[%s2 + $0x30] sm:$0xff]
    %v53 = vld [vmem:[%s2 + $0x38] sm:$0xff]
    %v54 = vld [vmem:[%s2 + $0x40] sm:$0xff]
    %v55 = vld [vmem:[%s2 + $0x48] sm:$0xff]
    %v56 = vld [vmem:[%s2 + $0x50] sm:$0xff]
    %v57 = vld [vmem:[%s2 + $0x58] sm:$0xff]
    %v58 = vld [vmem:[%s2 + $0x60] sm:$0xff]
    %v59 = vld [vmem:[%s2 + $0x68] sm:$0xff]
    %v60 = vld [vmem:[%s2 + $0x70] sm:$0xff]
    %v61 = vld [vmem:[%s2 + $0x78] sm:$0xff]
    %63 = vset.pattern.permute.xlu0 0
    %64 = vperm.xlu0 %63, %v46
    %v65 = vpop.permute.xlu0 %64
    %68 = vset.pattern.permute.xlu0 0
    %69 = vperm.xlu0 %68, %v47
    %v70 = vpop.permute.xlu0 %69
    %73 = vset.pattern.permute.xlu0 0
    %74 = vperm.xlu0 %73, %v48
    %v75 = vpop.permute.xlu0 %74
    %78 = vset.pattern.permute.xlu0 0
    %79 = vperm.xlu0 %78, %v49
    %v80 = vpop.permute.xlu0 %79
    %83 = vset.pattern.permute.xlu0 0
    %84 = vperm.xlu0 %83, %v50
    %v85 = vpop.permute.xlu0 %84
    %88 = vset.pattern.permute.xlu0 0
    %89 = vperm.xlu0 %88, %v51
    %v90 = vpop.permute.xlu0 %89
    %93 = vset.pattern.permute.xlu0 0
    %94 = vperm.xlu0 %93, %v52
    %v95 = vpop.permute.xlu0 %94
    %98 = vset.pattern.permute.xlu0 0
    %99 = vperm.xlu0 %98, %v53
    %v100 = vpop.permute.xlu0 %99
    %103 = vset.pattern.permute.xlu0 0
    %104 = vperm.xlu0 %103, %v54
    %v105 = vpop.permute.xlu0 %104
    %108 = vset.pattern.permute.xlu0 0
    %109 = vperm.xlu0 %108, %v55
    %v110 = vpop.permute.xlu0 %109
    %113 = vset.pattern.permute.xlu0 0
    %114 = vperm.xlu0 %113, %v56
    %v115 = vpop.permute.xlu0 %114
    %118 = vset.pattern.permute.xlu0 0
    %119 = vperm.xlu0 %118, %v57
    %v120 = vpop.permute.xlu0 %119
    %123 = vset.pattern.permute.xlu0 0
    %124 = vperm.xlu0 %123, %v58
    %v125 = vpop.permute.xlu0 %124
    %128 = vset.pattern.permute.xlu0 0
    %129 = vperm.xlu0 %128, %v59
    %v130 = vpop.permute.xlu0 %129
    %133 = vset.pattern.permute.xlu0 0
    %134 = vperm.xlu0 %133, %v60
    %v135 = vpop.permute.xlu0 %134
    %138 = vset.pattern.permute.xlu0 0
    %139 = vperm.xlu0 %138, %v61
    %v140 = vpop.permute.xlu0 %139
    %vm142 = vcmask 130048
    %v144 = vsel %vm142, %v28, 0
    %v147 = vsel %vm142, %v29, 0
    %v150 = vsel %vm142, %v30, 0
    %v153 = vsel %vm142, %v31, 0
    %v156 = vsel %vm142, %v32, 0
    %v159 = vsel %vm142, %v33, 0
    %v162 = vsel %vm142, %v34, 0
    %v165 = vsel %vm142, %v35, 0
    %v168 = vsel %vm142, %v36, 0
    %v171 = vsel %vm142, %v37, 0
    %v174 = vsel %vm142, %v38, 0
    %v177 = vsel %vm142, %v39, 0
    %v180 = vsel %vm142, %v40, 0
    %v183 = vsel %vm142, %v41, 0
    %v186 = vsel %vm142, %v42, 0
    %v189 = vsel %vm142, %v43, 0
    %191 = vmatprep.subr.mxu0 0.0
    %192 = vmatpush1.msra.mxu0 0.0
    %193 = vmatprep.subr.mxu0 0.0
    %194 = vmatpush1.msra.mxu0 0.0
    %195 = vmatprep.subr.mxu0 0.0
    %196 = vmatpush1.msra.mxu0 0.0
    %197 = vmatprep.subr.mxu0 0.0
    %198 = vmatpush1.msra.mxu0 0.0
    %199 = vmatprep.subr.mxu0 0.0
    %200 = vmatpush1.msra.mxu0 0.0
    %201 = vmatprep.subr.mxu0 0.0
    %202 = vmatpush1.msra.mxu0 0.0
    %203 = vmatprep.subr.mxu0 0.0
    %204 = vmatpush1.msra.mxu0 0.0
    %205 = vmatprep.subr.mxu0 0.0
    %206 = vmatpush1.msra.mxu0 0.0
    %207 = vmatprep.subr.mxu0 0.0
    %208 = vmatpush1.msra.mxu0 0.0
    %209 = vmatprep.subr.mxu0 0.0
    %210 = vmatpush1.msra.mxu0 0.0
    %211 = vmatprep.subr.mxu0 0.0
    %212 = vmatpush1.msra.mxu0 0.0
    %213 = vmatprep.subr.mxu0 0.0
    %214 = vmatpush1.msra.mxu0 0.0
    %215 = vmatprep.subr.mxu0 0.0
    %216 = vmatpush1.msra.mxu0 0.0
    %217 = vmatprep.subr.mxu0 0.0
    %218 = vmatpush1.msra.mxu0 0.0
    %219 = vmatprep.subr.mxu0 0.0
    %220 = vmatpush1.msra.mxu0 %v45
    %221 = vmatprep.subr.mxu0 0.0
    %222 = vmatpush1.msra.mxu0 %v44
    %223 = vmatprep.subr.mxu0 0.0
    %224 = vmatpush2.msra.mxu0 0.0
    %225 = vmatprep.subr.mxu0 0.0
    %226 = vmatpush2.msra.mxu0 0.0
    %227 = vmatprep.subr.mxu0 0.0
    %228 = vmatpush2.msra.mxu0 0.0
    %229 = vmatprep.subr.mxu0 0.0
    %230 = vmatpush2.msra.mxu0 0.0
    %231 = vmatprep.subr.mxu0 0.0
    %232 = vmatpush2.msra.mxu0 0.0
    %233 = vmatprep.subr.mxu0 0.0
    %234 = vmatpush2.msra.mxu0 0.0
    %235 = vmatprep.subr.mxu0 0.0
    %236 = vmatpush2.msra.mxu0 0.0
    %237 = vmatprep.subr.mxu0 0.0
    %238 = vmatpush2.msra.mxu0 0.0
    %239 = vmatprep.subr.mxu0 0.0
    %240 = vmatpush2.msra.mxu0 0.0
    %241 = vmatprep.subr.mxu0 0.0
    %242 = vmatpush2.msra.mxu0 0.0
    %243 = vmatprep.subr.mxu0 0.0
    %244 = vmatpush2.msra.mxu0 0.0
    %245 = vmatprep.subr.mxu0 0.0
    %246 = vmatpush2.msra.mxu0 0.0
    %247 = vmatprep.subr.mxu0 0.0
    %248 = vmatpush2.msra.mxu0 0.0
    %249 = vmatprep.subr.mxu0 0.0
    %250 = vmatpush2.msra.mxu0 0.0
    %251 = vmatprep.subr.mxu0 0.0
    %252 = vmatpush2.msra.mxu0 0.0
    %253 = vmatprep.subr.mxu0 0.0
    %254 = vmatpush2.msra.mxu0 0.0
    %255 = vmatprep.mubr.f32.mxu0 0.0
    %256 = vmatmul.mubr.f32.gmra.mxu0 %v144
    %v257 = vpop.f32.mrf.mxu0
    %v258 = vadd.f32 %v65, %v257
    %v259 = vpop.f32.mrf.mxu0
    %260 = vmatprep.mubr.f32.mxu0 0.0
    %261 = vmatmul.mubr.f32.gmra.mxu0 %v147
    %v262 = vpop.f32.mrf.mxu0
    %v263 = vadd.f32 %v70, %v262
    %v264 = vpop.f32.mrf.mxu0
    %265 = vmatprep.mubr.f32.mxu0 0.0
    %266 = vmatmul.mubr.f32.gmra.mxu0 %v150
    %v267 = vpop.f32.mrf.mxu0
    %v268 = vadd.f32 %v75, %v267
    %v269 = vpop.f32.mrf.mxu0
    %270 = vmatprep.mubr.f32.mxu0 0.0
    %271 = vmatmul.mubr.f32.gmra.mxu0 %v153
    %v272 = vpop.f32.mrf.mxu0
    %v273 = vadd.f32 %v80, %v272
    %v274 = vpop.f32.mrf.mxu0
    %275 = vmatprep.mubr.f32.mxu0 0.0
    %276 = vmatmul.mubr.f32.gmra.mxu0 %v156
    %v277 = vpop.f32.mrf.mxu0
    %v278 = vadd.f32 %v85, %v277
    %v279 = vpop.f32.mrf.mxu0
    %280 = vmatprep.mubr.f32.mxu0 0.0
    %281 = vmatmul.mubr.f32.gmra.mxu0 %v159
    %v282 = vpop.f32.mrf.mxu0
    %v283 = vadd.f32 %v90, %v282
    %v284 = vpop.f32.mrf.mxu0
    %285 = vmatprep.mubr.f32.mxu0 0.0
    %286 = vmatmul.mubr.f32.gmra.mxu0 %v162
    %v287 = vpop.f32.mrf.mxu0
    %v288 = vadd.f32 %v95, %v287
    %v289 = vpop.f32.mrf.mxu0
    %290 = vmatprep.mubr.f32.mxu0 0.0
    %291 = vmatmul.mubr.f32.gmra.mxu0 %v165
    %v292 = vpop.f32.mrf.mxu0
    %v293 = vadd.f32 %v100, %v292
    %v294 = vpop.f32.mrf.mxu0
    %295 = vmatprep.mubr.f32.mxu0 0.0
    %296 = vmatmul.mubr.f32.gmra.mxu0 %v168
    %v297 = vpop.f32.mrf.mxu0
    %v298 = vadd.f32 %v105, %v297
    %v299 = vpop.f32.mrf.mxu0
    %300 = vmatprep.mubr.f32.mxu0 0.0
    %301 = vmatmul.mubr.f32.gmra.mxu0 %v171
    %v302 = vpop.f32.mrf.mxu0
    %v303 = vadd.f32 %v110, %v302
    %v304 = vpop.f32.mrf.mxu0
    %305 = vmatprep.mubr.f32.mxu0 0.0
    %306 = vmatmul.mubr.f32.gmra.mxu0 %v174
    %v307 = vpop.f32.mrf.mxu0
    %v308 = vadd.f32 %v115, %v307
    %v309 = vpop.f32.mrf.mxu0
    %310 = vmatprep.mubr.f32.mxu0 0.0
    %311 = vmatmul.mubr.f32.gmra.mxu0 %v177
    %v312 = vpop.f32.mrf.mxu0
    %v313 = vadd.f32 %v120, %v312
    %v314 = vpop.f32.mrf.mxu0
    %315 = vmatprep.mubr.f32.mxu0 0.0
    %316 = vmatmul.mubr.f32.gmra.mxu0 %v180
    %v317 = vpop.f32.mrf.mxu0
    %v318 = vadd.f32 %v125, %v317
    %v319 = vpop.f32.mrf.mxu0
    %320 = vmatprep.mubr.f32.mxu0 0.0
    %321 = vmatmul.mubr.f32.gmra.mxu0 %v183
    %v322 = vpop.f32.mrf.mxu0
    %v323 = vadd.f32 %v130, %v322
    %v324 = vpop.f32.mrf.mxu0
    %325 = vmatprep.mubr.f32.mxu0 0.0
    %326 = vmatmul.mubr.f32.gmra.mxu0 %v186
    %v327 = vpop.f32.mrf.mxu0
    %v328 = vadd.f32 %v135, %v327
    %v329 = vpop.f32.mrf.mxu0
    %330 = vmatprep.mubr.f32.mxu0 0.0
    %331 = vmatmul.mubr.f32.gmra.mxu0 %v189
    %v332 = vpop.f32.mrf.mxu0
    %v333 = vadd.f32 %v140, %v332
    %v334 = vpop.f32.mrf.mxu0
    %335 = vdwg.mxu0
    %v336 = vmax.f32 %v258, 0.0
    %v337 = vmax.f32 %v263, 0.0
    %v338 = vmax.f32 %v268, 0.0
    %v339 = vmax.f32 %v273, 0.0
    %v340 = vmax.f32 %v278, 0.0
    %v341 = vmax.f32 %v283, 0.0
    %v342 = vmax.f32 %v288, 0.0
    %v343 = vmax.f32 %v293, 0.0
    %v344 = vmax.f32 %v298, 0.0
    %v345 = vmax.f32 %v303, 0.0
    %v346 = vmax.f32 %v308, 0.0
    %v347 = vmax.f32 %v313, 0.0
    %v348 = vmax.f32 %v318, 0.0
    %v349 = vmax.f32 %v323, 0.0
    %v350 = vmax.f32 %v328, 0.0
    %v351 = vmax.f32 %v333, 0.0
    %v352 = vld [vmem:[%s3] sm:$0xff]
    %v353 = vld [vmem:[%s3 + $0x8] sm:$0xff]
    %v354 = vld [vmem:[%s3 + $0x10] sm:$0xff]
    %v355 = vld [vmem:[%s3 + $0x18] sm:$0xff]
    %v356 = vld [vmem:[%s3 + $0x20] sm:$0xff]
    %v357 = vld [vmem:[%s3 + $0x28] sm:$0xff]
    %v358 = vld [vmem:[%s3 + $0x30] sm:$0xff]
    %v359 = vld [vmem:[%s3 + $0x38] sm:$0xff]
    %v360 = vld [vmem:[%s4] sm:$0xff]
    %v361 = vld [vmem:[%s4 + $0x8] sm:$0xff]
    %v362 = vld [vmem:[%s4 + $0x10] sm:$0xff]
    %v363 = vld [vmem:[%s4 + $0x18] sm:$0xff]
    %v364 = vld [vmem:[%s4 + $0x20] sm:$0xff]
    %v365 = vld [vmem:[%s4 + $0x28] sm:$0xff]
    %v366 = vld [vmem:[%s4 + $0x30] sm:$0xff]
    %v367 = vld [vmem:[%s4 + $0x38] sm:$0xff]
    %369 = vset.pattern.permute.xlu0 0
    %370 = vperm.xlu0 %369, %v360
    %v371 = vpop.permute.xlu0 %370
    %374 = vset.pattern.permute.xlu0 0
    %375 = vperm.xlu0 %374, %v361
    %v376 = vpop.permute.xlu0 %375
    %379 = vset.pattern.permute.xlu0 0
    %380 = vperm.xlu0 %379, %v362
    %v381 = vpop.permute.xlu0 %380
    %384 = vset.pattern.permute.xlu0 0
    %385 = vperm.xlu0 %384, %v363
    %v386 = vpop.permute.xlu0 %385
    %389 = vset.pattern.permute.xlu0 0
    %390 = vperm.xlu0 %389, %v364
    %v391 = vpop.permute.xlu0 %390
    %394 = vset.pattern.permute.xlu0 0
    %395 = vperm.xlu0 %394, %v365
    %v396 = vpop.permute.xlu0 %395
    %399 = vset.pattern.permute.xlu0 0
    %400 = vperm.xlu0 %399, %v366
    %v401 = vpop.permute.xlu0 %400
    %404 = vset.pattern.permute.xlu0 0
    %405 = vperm.xlu0 %404, %v367
    %v406 = vpop.permute.xlu0 %405
    %408 = vmatprep.subr.mxu0 0.0
    %409 = vmatpush1.msra.mxu0 %v351
    %410 = vmatprep.subr.mxu0 0.0
    %411 = vmatpush1.msra.mxu0 %v350
    %412 = vmatprep.subr.mxu0 0.0
    %413 = vmatpush1.msra.mxu0 %v349
    %414 = vmatprep.subr.mxu0 0.0
    %415 = vmatpush1.msra.mxu0 %v348
    %416 = vmatprep.subr.mxu0 0.0
    %417 = vmatpush1.msra.mxu0 %v347
    %418 = vmatprep.subr.mxu0 0.0
    %419 = vmatpush1.msra.mxu0 %v346
    %420 = vmatprep.subr.mxu0 0.0
    %421 = vmatpush1.msra.mxu0 %v345
    %422 = vmatprep.subr.mxu0 0.0
    %423 = vmatpush1.msra.mxu0 %v344
    %424 = vmatprep.subr.mxu0 0.0
    %425 = vmatpush1.msra.mxu0 %v343
    %426 = vmatprep.subr.mxu0 0.0
    %427 = vmatpush1.msra.mxu0 %v342
    %428 = vmatprep.subr.mxu0 0.0
    %429 = vmatpush1.msra.mxu0 %v341
    %430 = vmatprep.subr.mxu0 0.0
    %431 = vmatpush1.msra.mxu0 %v340
    %432 = vmatprep.subr.mxu0 0.0
    %433 = vmatpush1.msra.mxu0 %v339
    %434 = vmatprep.subr.mxu0 0.0
    %435 = vmatpush1.msra.mxu0 %v338
    %436 = vmatprep.subr.mxu0 0.0
    %437 = vmatpush1.msra.mxu0 %v337
    %438 = vmatprep.subr.mxu0 0.0
    %439 = vmatpush1.msra.mxu0 %v336
    %440 = vmatprep.subr.mxu0 0.0
    %441 = vmatpush2.msra.mxu0 0.0
    %442 = vmatprep.subr.mxu0 0.0
    %443 = vmatpush2.msra.mxu0 0.0
    %444 = vmatprep.subr.mxu0 0.0
    %445 = vmatpush2.msra.mxu0 0.0
    %446 = vmatprep.subr.mxu0 0.0
    %447 = vmatpush2.msra.mxu0 0.0
    %448 = vmatprep.subr.mxu0 0.0
    %449 = vmatpush2.msra.mxu0 0.0
    %450 = vmatprep.subr.mxu0 0.0
    %451 = vmatpush2.msra.mxu0 0.0
    %452 = vmatprep.subr.mxu0 0.0
    %453 = vmatpush2.msra.mxu0 0.0
    %454 = vmatprep.subr.mxu0 0.0
    %455 = vmatpush2.msra.mxu0 0.0
    %456 = vmatprep.subr.mxu0 0.0
    %457 = vmatpush2.msra.mxu0 0.0
    %458 = vmatprep.subr.mxu0 0.0
    %459 = vmatpush2.msra.mxu0 0.0
    %460 = vmatprep.subr.mxu0 0.0
    %461 = vmatpush2.msra.mxu0 0.0
    %462 = vmatprep.subr.mxu0 0.0
    %463 = vmatpush2.msra.mxu0 0.0
    %464 = vmatprep.subr.mxu0 0.0
    %465 = vmatpush2.msra.mxu0 0.0
    %466 = vmatprep.subr.mxu0 0.0
    %467 = vmatpush2.msra.mxu0 0.0
    %468 = vmatprep.subr.mxu0 0.0
    %469 = vmatpush2.msra.mxu0 0.0
    %470 = vmatprep.subr.mxu0 0.0
    %471 = vmatpush2.msra.mxu0 0.0
    %472 = vmatprep.mubr.f32.mxu0 0.0
    %473 = vmatmul.mubr.f32.gmra.mxu0 %v352
    %v474 = vpop.f32.mrf.mxu0
    %v475 = vadd.f32 %v371, %v474
    %v476 = vpop.f32.mrf.mxu0
    %477 = vmatprep.mubr.f32.mxu0 0.0
    %478 = vmatmul.mubr.f32.gmra.mxu0 %v353
    %v479 = vpop.f32.mrf.mxu0
    %v480 = vadd.f32 %v376, %v479
    %v481 = vpop.f32.mrf.mxu0
    %482 = vmatprep.mubr.f32.mxu0 0.0
    %483 = vmatmul.mubr.f32.gmra.mxu0 %v354
    %v484 = vpop.f32.mrf.mxu0
    %v485 = vadd.f32 %v381, %v484
    %v486 = vpop.f32.mrf.mxu0
    %487 = vmatprep.mubr.f32.mxu0 0.0
    %488 = vmatmul.mubr.f32.gmra.mxu0 %v355
    %v489 = vpop.f32.mrf.mxu0
    %v490 = vadd.f32 %v386, %v489
    %v491 = vpop.f32.mrf.mxu0
    %492 = vmatprep.mubr.f32.mxu0 0.0
    %493 = vmatmul.mubr.f32.gmra.mxu0 %v356
    %v494 = vpop.f32.mrf.mxu0
    %v495 = vadd.f32 %v391, %v494
    %v496 = vpop.f32.mrf.mxu0
    %497 = vmatprep.mubr.f32.mxu0 0.0
    %498 = vmatmul.mubr.f32.gmra.mxu0 %v357
    %v499 = vpop.f32.mrf.mxu0
    %v500 = vadd.f32 %v396, %v499
    %v501 = vpop.f32.mrf.mxu0
    %502 = vmatprep.mubr.f32.mxu0 0.0
    %503 = vmatmul.mubr.f32.gmra.mxu0 %v358
    %v504 = vpop.f32.mrf.mxu0
    %v505 = vadd.f32 %v401, %v504
    %v506 = vpop.f32.mrf.mxu0
    %507 = vmatprep.mubr.f32.mxu0 0.0
    %508 = vmatmul.mubr.f32.gmra.mxu0 %v359
    %v509 = vpop.f32.mrf.mxu0
    %v510 = vadd.f32 %v406, %v509
    %v511 = vpop.f32.mrf.mxu0
    %512 = vdwg.mxu0
    %v513 = vmax.f32 %v475, 0.0
    %v514 = vmax.f32 %v480, 0.0
    %v515 = vmax.f32 %v485, 0.0
    %v516 = vmax.f32 %v490, 0.0
    %v517 = vmax.f32 %v495, 0.0
    %v518 = vmax.f32 %v500, 0.0
    %v519 = vmax.f32 %v505, 0.0
    %v520 = vmax.f32 %v510, 0.0
    %v521 = vld [vmem:[%s5] sm:$0x1]
    %s522 = sld [smem:[#allocation2]]
    %v523 = vstv %s522
    %vm524 = vcmask 523264
    %v526 = vsel %vm524, %v521, 0
    %528 = vmatprep.subr.mxu0 0.0
    %529 = vmatpush1.msra.mxu0 0.0
    %530 = vmatprep.subr.mxu0 0.0
    %531 = vmatpush1.msra.mxu0 0.0
    %532 = vmatprep.subr.mxu0 0.0
    %533 = vmatpush1.msra.mxu0 0.0
    %534 = vmatprep.subr.mxu0 0.0
    %535 = vmatpush1.msra.mxu0 0.0
    %536 = vmatprep.subr.mxu0 0.0
    %537 = vmatpush1.msra.mxu0 0.0
    %538 = vmatprep.subr.mxu0 0.0
    %539 = vmatpush1.msra.mxu0 0.0
    %540 = vmatprep.subr.mxu0 0.0
    %541 = vmatpush1.msra.mxu0 0.0
    %542 = vmatprep.subr.mxu0 0.0
    %543 = vmatpush1.msra.mxu0 0.0
    %544 = vmatprep.subr.mxu0 0.0
    %545 = vmatpush1.msra.mxu0 %v520
    %546 = vmatprep.subr.mxu0 0.0
    %547 = vmatpush1.msra.mxu0 %v519
    %548 = vmatprep.subr.mxu0 0.0
    %549 = vmatpush1.msra.mxu0 %v518
    %550 = vmatprep.subr.mxu0 0.0
    %551 = vmatpush1.msra.mxu0 %v517
    %552 = vmatprep.subr.mxu0 0.0
    %553 = vmatpush1.msra.mxu0 %v516
    %554 = vmatprep.subr.mxu0 0.0
    %555 = vmatpush1.msra.mxu0 %v515
    %556 = vmatprep.subr.mxu0 0.0
    %557 = vmatpush1.msra.mxu0 %v514
    %558 = vmatprep.subr.mxu0 0.0
    %559 = vmatpush1.msra.mxu0 %v513
    %560 = vmatprep.subr.mxu0 0.0
    %561 = vmatpush2.msra.mxu0 0.0
    %562 = vmatprep.subr.mxu0 0.0
    %563 = vmatpush2.msra.mxu0 0.0
    %564 = vmatprep.subr.mxu0 0.0
    %565 = vmatpush2.msra.mxu0 0.0
    %566 = vmatprep.subr.mxu0 0.0
    %567 = vmatpush2.msra.mxu0 0.0
    %568 = vmatprep.subr.mxu0 0.0
    %569 = vmatpush2.msra.mxu0 0.0
    %570 = vmatprep.subr.mxu0 0.0
    %571 = vmatpush2.msra.mxu0 0.0
    %572 = vmatprep.subr.mxu0 0.0
    %573 = vmatpush2.msra.mxu0 0.0
    %574 = vmatprep.subr.mxu0 0.0
    %575 = vmatpush2.msra.mxu0 0.0
    %576 = vmatprep.subr.mxu0 0.0
    %577 = vmatpush2.msra.mxu0 0.0
    %578 = vmatprep.subr.mxu0 0.0
    %579 = vmatpush2.msra.mxu0 0.0
    %580 = vmatprep.subr.mxu0 0.0
    %581 = vmatpush2.msra.mxu0 0.0
    %582 = vmatprep.subr.mxu0 0.0
    %583 = vmatpush2.msra.mxu0 0.0
    %584 = vmatprep.subr.mxu0 0.0
    %585 = vmatpush2.msra.mxu0 0.0
    %586 = vmatprep.subr.mxu0 0.0
    %587 = vmatpush2.msra.mxu0 0.0
    %588 = vmatprep.subr.mxu0 0.0
    %589 = vmatpush2.msra.mxu0 0.0
    %590 = vmatprep.subr.mxu0 0.0
    %591 = vmatpush2.msra.mxu0 0.0
    %592 = vmatprep.mubr.f32.mxu0 0.0
    %593 = vmatmul.mubr.f32.gmra.mxu0 %v526
    %v594 = vpop.f32.mrf.mxu0
    %v595 = vadd.f32 %v523, %v594
    %v596 = vpop.f32.mrf.mxu0
    %597 = vdwg.mxu0
    %vm598 = vcmask 8192
    %599 = vst.msk [vmem:[#allocation3] sm:$0x1] %vm598, %v595
    // Predicated region
    $region30: #{tpu_custom_call.1} parent=1 // pred_check
      _
    $region31: #{tpu_custom_call.1} parent=1 // pred_check_branch
      %601 = sbr.rel (0) target = $region33
    $region32: #{tpu_custom_call.1} parent=1 // pred_region
      %s603 = ssub.s32 16, 16
      %604 = vsyncadd [#allocation4], %s603
      %s606 = sshll.u32 [#allocation3], 4
      %s607 = int_to_ptr.vmem [resolvable:$true] %s606
      %609 = dma.vmem_to_hbm [thread:$0]  %s607, 16, %s7, [#allocation4]
    $region33: #{tpu_custom_call.1} parent=1 // pred_fallthru
      _
    // Predicated region
    $region34: #{tpu_custom_call.1} parent=1 // pred_check
      _
    $region35: #{tpu_custom_call.1} parent=1 // pred_check_branch
      %611 = sbr.rel (0) target = $region37
    $region36: #{tpu_custom_call.1} parent=1 // pred_region
      %612 = dma.done [#allocation4], 16
    $region37: #{tpu_custom_call.1} parent=1 // pred_fallthru
      _
    %613 = vsyncpa [#allocation4], 1

</llo_original>
